<compile_context>
chip_gen: v7x
topology: tpu7x:2x2x1
jax: 0.10.0
libtpu: 0.0.40
codegen_flags: <defaults>
</compile_context>

<pallas_src>
import functools
import math
from typing import NamedTuple, Tuple

import jax
import jax.numpy as jnp
from jax import lax
from jax.experimental import pallas as pl
from jax.experimental.pallas import tpu as pltpu

LANE = 128


def _rup(n, m=LANE):
    return ((n + m - 1) // m) * m


def _pad2d(a, rows, cols):
    return jnp.pad(a, ((0, rows - a.shape[0]), (0, cols - a.shape[1])))


class LayerMeta(NamedTuple):
    gp: int
    wp: int
    g_true: int
    w_true: int
    add_graph_res: bool
    add_wave_res: bool
    inv_mg: float
    inv_mw: float


class Meta(NamedTuple):
    B: int
    N: int
    d0p: int
    layers: Tuple[LayerMeta, ...]


# ----------------------------------------------------------------------------
# Fused Pallas kernel (res-projection + all layers in one call)
# ----------------------------------------------------------------------------
def _make_fused_kernel(meta: Meta):
    B, N = meta.B, meta.N
    n_layers = len(meta.layers)

    def kernel(*refs):
        # refs = x0, adj, wrc_all, brc_all, (wg, bg, wwo, bwo) * n_layers, out
        x0_ref, adj_ref, wrc_ref, brc_ref = refs[:4]
        out_ref = refs[-1]
        lrefs = refs[4:-1]

        x0 = x0_ref[...]              # (M, d0p) f32, padded cols are exactly 0
        adj = adj_ref[...]            # (N, N)  f32 row-normalized adjacency

        # Residual projections for ALL layers (folded to x0-space on the host),
        # hoisted out of the layer loop: one wide f32 matmul, sliced per layer
        # at 128-lane boundaries.  Kept f32 because it feeds the theta gates.
        rp_all = jnp.dot(x0, wrc_ref[...],
                         preferred_element_type=jnp.float32) + brc_ref[...]

        cur = x0
        out = None
        col = 0
        for li in range(n_layers):
            lm = meta.layers[li]
            wg, bg, wwo, bwo = lrefs[4 * li: 4 * li + 4]
            rpg = rp_all[:, col:col + lm.gp]
            col += lm.gp
            rpw = rp_all[:, col:col + lm.wp]
            col += lm.wp

            # ---- GraphKANLayer: per-batch adjacency aggregation (f32; the
            #      single (N,N) adj tile is reused for every batch, rows are
            #      sliced at multiples of N=8 so slices stay sublane-aligned),
            #      then the feature Linear on the MXU (bf16 in, f32 acc).
            agg = jnp.concatenate(
                [jnp.dot(adj, cur[b * N:(b + 1) * N, :],
                         preferred_element_type=jnp.float32)
                 for b in range(B)], axis=0)
            xg = jnp.dot(agg.astype(jnp.bfloat16), wg[...],
                         preferred_element_type=jnp.float32) + bg[...]
            if lm.add_graph_res:            # static flag from TRUE dims
                xg = xg + cur

            # ---- graph gating: sigmoid of the global MSE over true elements.
            #      Padded lanes are exactly zero by construction (zero-padded
            #      weights/biases + zero-padded x0), so the SSE over the padded
            #      block equals the SSE over true elements and
            #      inv_mg = 1/(M*g_true) gives the exact mean.
            dg = xg - rpg
            theta_g = jax.nn.sigmoid(jnp.sum(dg * dg) * lm.inv_mg)
            xg = rpg + theta_g * dg          # == theta*xg + (1-theta)*rpg

            # ---- WaveletKANLayer: hard-Gumbel-selected db1 DWT of a scalar +
            #      per-feature Linear + linear_out, collapsed on the host into
            #      ONE (gp, wp) matmul.
            xw = jnp.dot(xg.astype(jnp.bfloat16), wwo[...],
                         preferred_element_type=jnp.float32) + bwo[...]
            if lm.add_wave_res:
                xw = xw + xg

            dw = xw - rpw
            theta_w = jax.nn.sigmoid(jnp.sum(dw * dw) * lm.inv_mw)
            out = rpw + theta_w * dw

            cur = xg

        out_ref[...] = out

    return kernel


@functools.partial(jax.jit, static_argnums=(2,))
def gawkan_forward_pallas(x, arrays, meta: Meta):
    """Jitted wrapper: pad -> fused pallas_call -> slice/reshape (one dispatch)."""
    B, N, d0p = meta.B, meta.N, meta.d0p
    M = B * N

    x2 = _pad2d(x.reshape(M, -1), M, d0p)        # (M, d0p) f32, zero-padded cols

    operands = [x2, arrays["adj"], arrays["wrc"], arrays["brc"]]
    for la in arrays["layers"]:
        operands += [la["wg"], la["bg"], la["wwo"], la["bwo"]]

    wp_last = meta.layers[-1].wp

    # --- cost estimate / VMEM budget (static Python ints under jit) ---
    io_bytes = sum(math.prod(op.shape) * jnp.dtype(op.dtype).itemsize
                   for op in operands) + M * wp_last * 4
    w_total = sum(lm.gp + lm.wp for lm in meta.layers)
    flops = 2 * M * d0p * w_total                       # hoisted rp matmul
    f_in = d0p
    for lm in meta.layers:
        flops += 2 * B * N * N * f_in                   # per-batch aggregation
        flops += 2 * M * f_in * lm.gp                   # graph linear
        flops += 2 * M * lm.gp * lm.wp                  # collapsed wavelet linear
        f_in = lm.gp
    vmem_limit = int(min(64 << 20, max(16 << 20, 2 * io_bytes + (8 << 20))))

    out = pl.pallas_call(
        _make_fused_kernel(meta),
        out_shape=jax.ShapeDtypeStruct((M, wp_last), jnp.float32),
        in_specs=[pl.BlockSpec(memory_space=pltpu.MemorySpace.VMEM)] * len(operands),
        out_specs=pl.BlockSpec(memory_space=pltpu.MemorySpace.VMEM),
        compiler_params=pltpu.CompilerParams(vmem_limit_bytes=vmem_limit),
        cost_estimate=pl.CostEstimate(flops=flops,
                                      transcendentals=2 * len(meta.layers),
                                      bytes_accessed=io_bytes),
    )(*operands)

    w_true = meta.layers[-1].w_true
    return out[:, :w_true].reshape(B, N, w_true)


# ----------------------------------------------------------------------------
# Host-side parameter construction (deterministic, PyTorch-equivalent layout)
# ----------------------------------------------------------------------------
def _init_linear(key, fan_in, fan_out):
    k1, k2 = jax.random.split(key)
    bound = 1.0 / math.sqrt(fan_in)
    w = jax.random.uniform(k1, (fan_in, fan_out), jnp.float32, -bound, bound)
    b = jax.random.uniform(k2, (fan_out,), jnp.float32, -bound, bound)
    return w, b


def _dwt_delta_vector(level, max_level):
    """db1 / mode='zero' DWT (J=level) of a delta signal of length 2**level,
    concatenated [cA_J, cD_1, ..., cD_J], zero-padded to 2**max_level."""
    full = 2 ** max_level
    vec = [0.0] * full
    vec[0] = 2.0 ** (-level / 2.0)          # cA_level[0]
    pos = 1
    for m in range(1, level + 1):
        vec[pos] = 2.0 ** (-m / 2.0)        # cD_m[0]
        pos += 2 ** (level - m)             # len(cD_m)
    return jnp.array(vec, dtype=jnp.float32)


def _wavelet_affine(key, feat, max_level):
    """Per-feature scale c and bias b equivalent to WaveletKAN nonlinear[i]
    applied to the (hard Gumbel-selected) DWT features of a scalar input."""
    full = 2 ** max_level
    k_nl, k_logit, k_gumb = jax.random.split(key, 3)
    bound = 1.0 / math.sqrt(full)
    w_nl = jax.random.uniform(k_nl, (feat, full), jnp.float32, -bound, bound)
    b_nl = jax.random.uniform(jax.random.fold_in(k_nl, 1), (feat,), jnp.float32,
                              -bound, bound)
    level_logits = jax.random.normal(k_logit, (max_level,), jnp.float32)
    u = jax.random.uniform(k_gumb, (feat, max_level), jnp.float32, 1e-6, 1.0 - 1e-6)
    gumbel = -jnp.log(-jnp.log(u))
    sel = jnp.argmax(level_logits[None, :] + gumbel, axis=-1)      # 0-based
    delta_mat = jnp.stack(
        [_dwt_delta_vector(j, max_level) for j in range(1, max_level + 1)], axis=0)
    c = jnp.sum(delta_mat[sel] * w_nl, axis=-1)                    # (feat,)
    return c, b_nl


def build_params(key, *, num_nodes, input_dim, output_dim, hidden_dim,
                 num_layers, max_dwt_level):
    keys = jax.random.split(key, 4 + 8 * num_layers)
    ki = iter(keys)

    adj = jax.random.uniform(next(ki), (num_nodes, num_nodes), jnp.float32)
    adj = adj / jnp.sum(adj, axis=1, keepdims=True)

    res_w, res_b = _init_linear(next(ki), input_dim, output_dim)

    layer_in_dims = [input_dim] + [hidden_dim] * (num_layers - 1)
    graph_out_dims = [hidden_dim] * (num_layers - 1) + [hidden_dim]
    wavelet_out_dims = [hidden_dim] * (num_layers - 1) + [output_dim]

    layers = []
    for i in range(num_layers):
        din, g, w = layer_in_dims[i], graph_out_dims[i], wavelet_out_dims[i]
        w_g, b_g = _init_linear(next(ki), din, g)
        w_rg, b_rg = _init_linear(next(ki), output_dim, g)
        w_rw, b_rw = _init_linear(next(ki), output_dim, w)
        w_wout, b_wout = _init_linear(next(ki), g, w)
        c_wav, b_wav = _wavelet_affine(next(ki), g, max_dwt_level)
        layers.append(dict(
            w_g=w_g, b_g=b_g, w_rg=w_rg, b_rg=b_rg,
            c_wav=c_wav, b_wav=b_wav, w_wout=w_wout, b_wout=b_wout,
            w_rw=w_rw, b_rw=b_rw,
            add_graph_res=(din == g),
            add_wave_res=(g == w),
        ))
    return dict(adj=adj, res_w=res_w, res_b=res_b, layers=layers)


def pack_params(params, *, batch):
    """Exact host-side algebraic folds + lane padding + bf16 casts, done ONCE.

    Returns (arrays, meta): arrays is a jittable pytree of device constants,
    meta is a hashable NamedTuple of static shape/flag info.
    """
    res_w, res_b = params["res_w"], params["res_b"]
    d0 = res_w.shape[0]
    d0p = _rup(d0)
    N = params["adj"].shape[0]
    M = batch * N

    layer_arrays = []
    layer_meta = []
    wrc_cols, brc_cols = [], []
    for p in params["layers"]:
        din, g = p["w_g"].shape
        w = p["w_wout"].shape[1]
        dinp, gp, wp = _rup(din), _rup(g), _rup(w)

        # graph linear (bf16 operands, zero padding)
        wg = _pad2d(p["w_g"], dinp, gp).astype(jnp.bfloat16)
        bg = _pad2d(p["b_g"].reshape(1, -1), 1, gp)

        # residual projections folded through res = x0 @ res_w + res_b and
        # concatenated across ALL layers into one wide f32 weight
        # (lane-aligned splits: every gp/wp is a multiple of 128).
        w_rg_f = res_w @ p["w_rg"]
        b_rg_f = res_b @ p["w_rg"] + p["b_rg"]
        w_rw_f = res_w @ p["w_rw"]
        b_rw_f = res_b @ p["w_rw"] + p["b_rw"]
        wrc_cols += [_pad2d(w_rg_f, d0p, gp), _pad2d(w_rw_f, d0p, wp)]
        brc_cols += [_pad2d(b_rg_f.reshape(1, -1), 1, gp),
                     _pad2d(b_rw_f.reshape(1, -1), 1, wp)]

        # wavelet per-feature affine folded into linear_out
        wwo_f = p["c_wav"][:, None] * p["w_wout"]
        bwo_f = p["b_wav"] @ p["w_wout"] + p["b_wout"]
        wwo = _pad2d(wwo_f, gp, wp).astype(jnp.bfloat16)
        bwo = _pad2d(bwo_f.reshape(1, -1), 1, wp)

        layer_arrays.append(dict(wg=wg, bg=bg, wwo=wwo, bwo=bwo))
        layer_meta.append(LayerMeta(
            gp=gp, wp=wp, g_true=g, w_true=w,
            add_graph_res=bool(p["add_graph_res"]),
            add_wave_res=bool(p["add_wave_res"]),
            inv_mg=1.0 / (M * g), inv_mw=1.0 / (M * w)))

    arrays = dict(
        adj=params["adj"].astype(jnp.float32),            # (N, N), reused per batch
        wrc=jnp.concatenate(wrc_cols, axis=1),             # (d0p, sum gp+wp) f32
        brc=jnp.concatenate(brc_cols, axis=1),             # (1,   sum gp+wp) f32
        layers=layer_arrays)
    meta = Meta(B=batch, N=N, d0p=d0p, layers=tuple(layer_meta))
    return arrays, meta


# ----------------------------------------------------------------------------
# References
# ----------------------------------------------------------------------------
def gawkan_forward_ref(x, params):
    """Original (full-f32) semantics with unfolded params."""
    res = x @ params["res_w"] + params["res_b"]
    cur = x
    out = None
    for p in params["layers"]:
        agg = jnp.einsum("ij,bjf->bif", params["adj"], cur)
        xg = agg @ p["w_g"] + p["b_g"]
        if p["add_graph_res"]:
            xg = xg + cur
        rpg = res @ p["w_rg"] + p["b_rg"]
        tg = jax.nn.sigmoid(jnp.mean((xg - rpg) ** 2))
        xg = tg * xg + (1.0 - tg) * rpg
        scaled = xg * p["c_wav"] + p["b_wav"]
        xw = scaled @ p["w_wout"] + p["b_wout"]
        if p["add_wave_res"]:
            xw = xw + xg
        rpw = res @ p["w_rw"] + p["b_rw"]
        tw = jax.nn.sigmoid(jnp.mean((xw - rpw) ** 2))
        xw = tw * xw + (1.0 - tw) * rpw
        cur = xg
        out = xw
    return out


def gawkan_forward_folded_ref(x, arrays, meta: Meta):
    """Plain-JAX mirror of the kernel math (folds + precision split)."""
    B, N, d0p = meta.B, meta.N, meta.d0p
    M = B * N
    hi = lax.Precision.HIGHEST
    x2 = _pad2d(x.reshape(M, -1), M, d0p)
    adj = arrays["adj"]
    rp_all = jnp.dot(x2, arrays["wrc"], precision=hi,
                     preferred_element_type=jnp.float32) + arrays["brc"]
    cur = x2
    out = None
    col = 0
    for la, lm in zip(arrays["layers"], meta.layers):
        rpg = rp_all[:, col:col + lm.gp]
        col += lm.gp
        rpw = rp_all[:, col:col + lm.wp]
        col += lm.wp
        agg = jnp.concatenate(
            [jnp.dot(adj, cur[b * N:(b + 1) * N, :], precision=hi,
                     preferred_element_type=jnp.float32) for b in range(B)], axis=0)
        xg = jnp.dot(agg.astype(jnp.bfloat16), la["wg"],
                     preferred_element_type=jnp.float32) + la["bg"]
        if lm.add_graph_res:
            xg = xg + cur
        dg = xg - rpg
        tg = jax.nn.sigmoid(jnp.sum(dg * dg) * lm.inv_mg)
        xg = rpg + tg * dg
        xw = jnp.dot(xg.astype(jnp.bfloat16), la["wwo"],
                     preferred_element_type=jnp.float32) + la["bwo"]
        if lm.add_wave_res:
            xw = xw + xg
        dw = xw - rpw
        tw = jax.nn.sigmoid(jnp.sum(dw * dw) * lm.inv_mw)
        out = rpw + tw * dw
        cur = xg
    w_true = meta.layers[-1].w_true
    return out[:, :w_true].reshape(B, N, w_true)


# ----------------------------------------------------------------------------
if __name__ == "__main__":
    BATCH, NODES = 2, 8
    INPUT_DIM, OUTPUT_DIM, HIDDEN_DIM = 12, 1, 32
    NUM_LAYERS, MAX_DWT_LEVEL = 2, 3

    root = jax.random.PRNGKey(0)
    k_x, k_p = jax.random.split(root)
    x = jax.random.normal(k_x, (BATCH, NODES, INPUT_DIM), jnp.float32)

    params = build_params(
        k_p,
        num_nodes=NODES, input_dim=INPUT_DIM, output_dim=OUTPUT_DIM,
        hidden_dim=HIDDEN_DIM, num_layers=NUM_LAYERS,
        max_dwt_level=MAX_DWT_LEVEL,
    )
    arrays, meta = pack_params(params, batch=BATCH)

    out = jax.block_until_ready(gawkan_forward_pallas(x, arrays, meta))
    # Second call hits the jit cache (all plumbing compiled once).
    out = jax.block_until_ready(gawkan_forward_pallas(x, arrays, meta))
    assert out.shape == (BATCH, NODES, OUTPUT_DIM), out.shape
    assert bool(jnp.all(jnp.isfinite(out)))

    # Implementation check: kernel matches its own folded / precision-split math.
    folded = jax.block_until_ready(gawkan_forward_folded_ref(x, arrays, meta))
    assert bool(jnp.allclose(out, folded, atol=1e-2, rtol=1e-2)), (
        float(jnp.max(jnp.abs(out - folded))))

    # Semantic check vs. the full-f32 original math; looser tolerance only
    # because the kernel intentionally feeds bf16 weight operands to the MXU.
    ref = jax.block_until_ready(gawkan_forward_ref(x, params))
    assert bool(jnp.allclose(out, ref, atol=1e-1, rtol=1e-1)), (
        float(jnp.max(jnp.abs(out - ref))))

    print("KERNEL_OK")
</pallas_src>

<mosaic_0001>
module attributes {stable_mosaic.version = 11 : i64} {
  func.func @kernel(%arg0: memref<16x128xf32, #tpu.memory_space<vmem>>, %arg1: memref<8x8xf32, #tpu.memory_space<vmem>>, %arg2: memref<128x512xf32, #tpu.memory_space<vmem>>, %arg3: memref<1x512xf32, #tpu.memory_space<vmem>>, %arg4: memref<128x128xbf16, #tpu.memory_space<vmem>>, %arg5: memref<1x128xf32, #tpu.memory_space<vmem>>, %arg6: memref<128x128xbf16, #tpu.memory_space<vmem>>, %arg7: memref<1x128xf32, #tpu.memory_space<vmem>>, %arg8: memref<128x128xbf16, #tpu.memory_space<vmem>>, %arg9: memref<1x128xf32, #tpu.memory_space<vmem>>, %arg10: memref<128x128xbf16, #tpu.memory_space<vmem>>, %arg11: memref<1x128xf32, #tpu.memory_space<vmem>>, %arg12: memref<16x128xf32, #tpu.memory_space<vmem>>) attributes {dimension_semantics = [], scalar_prefetch = 0 : i64, scratch_operands = 0 : i64, tpu.core_type = #tpu.core_type<tc>} {
    %c0 = arith.constant 0 : index
    %c0_0 = arith.constant 0 : index
    %0 = vector.load %arg0[%c0, %c0_0] : memref<16x128xf32, #tpu.memory_space<vmem>>, vector<16x128xf32>
    %c0_1 = arith.constant 0 : index
    %c0_2 = arith.constant 0 : index
    %1 = vector.load %arg1[%c0_1, %c0_2] : memref<8x8xf32, #tpu.memory_space<vmem>>, vector<8x8xf32>
    %c0_3 = arith.constant 0 : index
    %c0_4 = arith.constant 0 : index
    %2 = vector.load %arg2[%c0_3, %c0_4] : memref<128x512xf32, #tpu.memory_space<vmem>>, vector<128x512xf32>
    %cst = arith.constant dense<0.000000e+00> : vector<16x512xf32>
    %3 = tpu.matmul %0, %2, %cst {dimension_numbers = #tpu.dot_dimension_numbers<[1], [0], [0], [1], [0, 0, 1, 1], [], []>} : vector<16x128xf32>, vector<128x512xf32>, vector<16x512xf32> -> vector<16x512xf32>
    %c0_5 = arith.constant 0 : index
    %c0_6 = arith.constant 0 : index
    %4 = vector.load %arg3[%c0_5, %c0_6] : memref<1x512xf32, #tpu.memory_space<vmem>>, vector<1x512xf32>
    %5 = vector.broadcast %4 : vector<1x512xf32> to vector<16x512xf32>
    %6 = arith.addf %3, %5 : vector<16x512xf32>
    %7 = vector.extract_strided_slice %6 {offsets = [0, 0], sizes = [16, 128], strides = [1, 1]} : vector<16x512xf32> to vector<16x128xf32>
    %8 = vector.extract_strided_slice %0 {offsets = [0, 0], sizes = [8, 128], strides = [1, 1]} : vector<16x128xf32> to vector<8x128xf32>
    %cst_7 = arith.constant dense<0.000000e+00> : vector<8x128xf32>
    %9 = tpu.matmul %1, %8, %cst_7 {dimension_numbers = #tpu.dot_dimension_numbers<[1], [0], [0], [1], [0, 0, 1, 1], [], []>} : vector<8x8xf32>, vector<8x128xf32>, vector<8x128xf32> -> vector<8x128xf32>
    %10 = vector.extract_strided_slice %0 {offsets = [8, 0], sizes = [8, 128], strides = [1, 1]} : vector<16x128xf32> to vector<8x128xf32>
    %cst_8 = arith.constant dense<0.000000e+00> : vector<8x128xf32>
    %11 = tpu.matmul %1, %10, %cst_8 {dimension_numbers = #tpu.dot_dimension_numbers<[1], [0], [0], [1], [0, 0, 1, 1], [], []>} : vector<8x8xf32>, vector<8x128xf32>, vector<8x128xf32> -> vector<8x128xf32>
    %12 = tpu.concatenate %9, %11 in 0 : vector<8x128xf32>, vector<8x128xf32> -> vector<16x128xf32>
    %13 = arith.truncf %12 : vector<16x128xf32> to vector<16x128xbf16>
    %c0_9 = arith.constant 0 : index
    %c0_10 = arith.constant 0 : index
    %14 = vector.load %arg4[%c0_9, %c0_10] : memref<128x128xbf16, #tpu.memory_space<vmem>>, vector<128x128xbf16>
    %cst_11 = arith.constant dense<0.000000e+00> : vector<16x128xf32>
    %15 = tpu.matmul %13, %14, %cst_11 {dimension_numbers = #tpu.dot_dimension_numbers<[1], [0], [0], [1], [0, 0, 1, 1], [], []>} : vector<16x128xbf16>, vector<128x128xbf16>, vector<16x128xf32> -> vector<16x128xf32>
    %c0_12 = arith.constant 0 : index
    %c0_13 = arith.constant 0 : index
    %16 = vector.load %arg5[%c0_12, %c0_13] : memref<1x128xf32, #tpu.memory_space<vmem>>, vector<1x128xf32>
    %17 = vector.broadcast %16 : vector<1x128xf32> to vector<16x128xf32>
    %18 = arith.addf %15, %17 : vector<16x128xf32>
    %19 = arith.subf %18, %7 : vector<16x128xf32>
    %20 = arith.mulf %19, %19 : vector<16x128xf32>
    %21 = vector.shape_cast %20 : vector<16x128xf32> to vector<1x16x128xf32>
    %cst_14 = arith.constant dense<0.000000e+00> : vector<1xf32>
    %22 = vector.multi_reduction <add>, %21, %cst_14 [1, 2] : vector<1x16x128xf32> to vector<1xf32>
    %23 = vector.shape_cast %22 : vector<1xf32> to vector<1x1x1xf32>
    %24 = vector.extract %23[0, 0, 0] : f32 from vector<1x1x1xf32>
    %cst_15 = arith.constant 0.001953125 : f32
    %25 = arith.mulf %24, %cst_15 : f32
    %26 = arith.negf %25 : f32
    %27 = math.exp %26 : f32
    %cst_16 = arith.constant 1.000000e+00 : f32
    %28 = arith.addf %cst_16, %27 : f32
    %29 = arith.divf %cst_16, %28 : f32
    %30 = vector.broadcast %29 : f32 to vector<16x128xf32>
    %31 = arith.mulf %30, %19 : vector<16x128xf32>
    %32 = arith.addf %7, %31 : vector<16x128xf32>
    %33 = vector.extract_strided_slice %6 {offsets = [0, 256], sizes = [16, 128], strides = [1, 1]} : vector<16x512xf32> to vector<16x128xf32>
    %34 = vector.extract_strided_slice %6 {offsets = [0, 384], sizes = [16, 128], strides = [1, 1]} : vector<16x512xf32> to vector<16x128xf32>
    %35 = vector.extract_strided_slice %32 {offsets = [0, 0], sizes = [8, 128], strides = [1, 1]} : vector<16x128xf32> to vector<8x128xf32>
    %cst_17 = arith.constant dense<0.000000e+00> : vector<8x128xf32>
    %36 = tpu.matmul %1, %35, %cst_17 {dimension_numbers = #tpu.dot_dimension_numbers<[1], [0], [0], [1], [0, 0, 1, 1], [], []>} : vector<8x8xf32>, vector<8x128xf32>, vector<8x128xf32> -> vector<8x128xf32>
    %37 = vector.extract_strided_slice %32 {offsets = [8, 0], sizes = [8, 128], strides = [1, 1]} : vector<16x128xf32> to vector<8x128xf32>
    %cst_18 = arith.constant dense<0.000000e+00> : vector<8x128xf32>
    %38 = tpu.matmul %1, %37, %cst_18 {dimension_numbers = #tpu.dot_dimension_numbers<[1], [0], [0], [1], [0, 0, 1, 1], [], []>} : vector<8x8xf32>, vector<8x128xf32>, vector<8x128xf32> -> vector<8x128xf32>
    %39 = tpu.concatenate %36, %38 in 0 : vector<8x128xf32>, vector<8x128xf32> -> vector<16x128xf32>
    %40 = arith.truncf %39 : vector<16x128xf32> to vector<16x128xbf16>
    %c0_19 = arith.constant 0 : index
    %c0_20 = arith.constant 0 : index
    %41 = vector.load %arg8[%c0_19, %c0_20] : memref<128x128xbf16, #tpu.memory_space<vmem>>, vector<128x128xbf16>
    %cst_21 = arith.constant dense<0.000000e+00> : vector<16x128xf32>
    %42 = tpu.matmul %40, %41, %cst_21 {dimension_numbers = #tpu.dot_dimension_numbers<[1], [0], [0], [1], [0, 0, 1, 1], [], []>} : vector<16x128xbf16>, vector<128x128xbf16>, vector<16x128xf32> -> vector<16x128xf32>
    %c0_22 = arith.constant 0 : index
    %c0_23 = arith.constant 0 : index
    %43 = vector.load %arg9[%c0_22, %c0_23] : memref<1x128xf32, #tpu.memory_space<vmem>>, vector<1x128xf32>
    %44 = vector.broadcast %43 : vector<1x128xf32> to vector<16x128xf32>
    %45 = arith.addf %42, %44 : vector<16x128xf32>
    %46 = arith.addf %45, %32 : vector<16x128xf32>
    %47 = arith.subf %46, %33 : vector<16x128xf32>
    %48 = arith.mulf %47, %47 : vector<16x128xf32>
    %49 = vector.shape_cast %48 : vector<16x128xf32> to vector<1x16x128xf32>
    %cst_24 = arith.constant dense<0.000000e+00> : vector<1xf32>
    %50 = vector.multi_reduction <add>, %49, %cst_24 [1, 2] : vector<1x16x128xf32> to vector<1xf32>
    %51 = vector.shape_cast %50 : vector<1xf32> to vector<1x1x1xf32>
    %52 = vector.extract %51[0, 0, 0] : f32 from vector<1x1x1xf32>
    %cst_25 = arith.constant 0.001953125 : f32
    %53 = arith.mulf %52, %cst_25 : f32
    %54 = arith.negf %53 : f32
    %55 = math.exp %54 : f32
    %cst_26 = arith.constant 1.000000e+00 : f32
    %56 = arith.addf %cst_26, %55 : f32
    %57 = arith.divf %cst_26, %56 : f32
    %58 = vector.broadcast %57 : f32 to vector<16x128xf32>
    %59 = arith.mulf %58, %47 : vector<16x128xf32>
    %60 = arith.addf %33, %59 : vector<16x128xf32>
    %61 = arith.truncf %60 : vector<16x128xf32> to vector<16x128xbf16>
    %c0_27 = arith.constant 0 : index
    %c0_28 = arith.constant 0 : index
    %62 = vector.load %arg10[%c0_27, %c0_28] : memref<128x128xbf16, #tpu.memory_space<vmem>>, vector<128x128xbf16>
    %cst_29 = arith.constant dense<0.000000e+00> : vector<16x128xf32>
    %63 = tpu.matmul %61, %62, %cst_29 {dimension_numbers = #tpu.dot_dimension_numbers<[1], [0], [0], [1], [0, 0, 1, 1], [], []>} : vector<16x128xbf16>, vector<128x128xbf16>, vector<16x128xf32> -> vector<16x128xf32>
    %c0_30 = arith.constant 0 : index
    %c0_31 = arith.constant 0 : index
    %64 = vector.load %arg11[%c0_30, %c0_31] : memref<1x128xf32, #tpu.memory_space<vmem>>, vector<1x128xf32>
    %65 = vector.broadcast %64 : vector<1x128xf32> to vector<16x128xf32>
    %66 = arith.addf %63, %65 : vector<16x128xf32>
    %67 = arith.subf %66, %34 : vector<16x128xf32>
    %68 = arith.mulf %67, %67 : vector<16x128xf32>
    %69 = vector.shape_cast %68 : vector<16x128xf32> to vector<1x16x128xf32>
    %cst_32 = arith.constant dense<0.000000e+00> : vector<1xf32>
    %70 = vector.multi_reduction <add>, %69, %cst_32 [1, 2] : vector<1x16x128xf32> to vector<1xf32>
    %71 = vector.shape_cast %70 : vector<1xf32> to vector<1x1x1xf32>
    %72 = vector.extract %71[0, 0, 0] : f32 from vector<1x1x1xf32>
    %cst_33 = arith.constant 6.250000e-02 : f32
    %73 = arith.mulf %72, %cst_33 : f32
    %74 = arith.negf %73 : f32
    %75 = math.exp %74 : f32
    %cst_34 = arith.constant 1.000000e+00 : f32
    %76 = arith.addf %cst_34, %75 : f32
    %77 = arith.divf %cst_34, %76 : f32
    %78 = vector.broadcast %77 : f32 to vector<16x128xf32>
    %79 = arith.mulf %78, %67 : vector<16x128xf32>
    %80 = arith.addf %34, %79 : vector<16x128xf32>
    %c0_35 = arith.constant 0 : index
    %c0_36 = arith.constant 0 : index
    %81 = vector.load %arg12[%c0_35, %c0_36] : memref<16x128xf32, #tpu.memory_space<vmem>>, vector<16x128xf32>
    tpu.vector_store %arg12[%c0_35, %c0_36], %80 {strides = array<i32>} : memref<16x128xf32, #tpu.memory_space<vmem>>, vector<16x128xf32>,
    return
  }
}

</mosaic_0001>

<llo_original>
// kernel: gawkan_forward_pallas.1
$region0: #{gawkan_forward_pallas.1}
  #allocation0 [shape = 'u32[]', space=smem, size = 0x4, offset = 0x4, fixed_abs, tag = 'smem constant byte address 0x4 - core index']
  #allocation1 [shape = 'u32[144,128]{1,0:T(1,128)}', space=vmem, size = 0x12000, scoped, tag = 'internal scratch']
  %s0 = inlined_call_operand.vmem [shape: f32[16,128], index: 0, kind: input, shape index: {}]
  %s1 = inlined_call_operand.hbm [shape: f32[8,8], index: 1, kind: input, shape index: {}]
  %s2 = inlined_call_operand.hbm [shape: f32[128,512], index: 2, kind: input, shape index: {}]
  %s3 = inlined_call_operand.vmem [shape: f32[1,512], index: 3, kind: input, shape index: {}]
  %s4 = inlined_call_operand.hbm [shape: bf16[128,128], index: 4, kind: input, shape index: {}]
  %s5 = inlined_call_operand.vmem [shape: f32[1,128], index: 5, kind: input, shape index: {}]
  %s6 = inlined_call_operand.hbm [shape: bf16[128,128], index: 6, kind: input, shape index: {}]
  %s7 = inlined_call_operand.vmem [shape: f32[1,128], index: 7, kind: input, shape index: {}]
  %s8 = inlined_call_operand.vmem [shape: bf16[128,128], index: 8, kind: input, shape index: {}]
  %s9 = inlined_call_operand.hbm [shape: f32[1,128], index: 9, kind: input, shape index: {}]
  %s10 = inlined_call_operand.hbm [shape: bf16[128,128], index: 10, kind: input, shape index: {}]
  %s11 = inlined_call_operand.hbm [shape: f32[1,128], index: 11, kind: input, shape index: {}]
  %s12 = inlined_call_operand.vmem [shape: f32[16,128], index: 12, kind: output, shape index: {}]
  %s13 = sld [smem:[#allocation0]]
  $region86: #{gawkan_forward_pallas.1} parent=0
    _
  %s15 = ssub.s32 1, %s13
  %s16 = scalar_select 0, %s15, %s13
  $region1: #{gawkan_forward_pallas.1} parent=0
    #allocation2 [shape = 'u8[4096]{0}', space=vmem, size = 0x1000, scoped, tag = 'input window, operand 1, single buffered']
    #allocation3 [shape = 's32[1]{0}', space=sflag, size = 0x4, scoped, tag = 'scoped memory for gawkan_forward_pallas.1']
    #allocation4 [shape = 'u8[262144]{0}', space=vmem, size = 0x40000, scoped, tag = 'input window, operand 2, single buffered']
    #allocation5 [shape = 's32[1]{0}', space=sflag, size = 0x4, scoped, tag = 'scoped memory for gawkan_forward_pallas.1']
    #allocation6 [shape = 'u8[32768]{0}', space=vmem, size = 0x8000, scoped, tag = 'input window, operand 4, single buffered']
    #allocation7 [shape = 'u8[32768]{0}', space=vmem, size = 0x8000, scoped, tag = 'input window, operand 6, single buffered']
    #allocation8 [shape = 's32[1]{0}', space=sflag, size = 0x4, scoped, tag = 'scoped memory for gawkan_forward_pallas.1']
    #allocation9 [shape = 'u8[512]{0}', space=vmem, size = 0x400, scoped, tag = 'input window, operand 9, single buffered']
    #allocation10 [shape = 'u8[32768]{0}', space=vmem, size = 0x8000, scoped, tag = 'input window, operand 10, single buffered']
    #allocation11 [shape = 's32[1]{0}', space=sflag, size = 0x4, scoped, tag = 'scoped memory for gawkan_forward_pallas.1']
    #allocation12 [shape = 'u8[512]{0}', space=vmem, size = 0x400, scoped, tag = 'input window, operand 11, single buffered']
    %17 = vsyncpa [#allocation3], 0
    %18 = vsyncpa [#allocation5], 0
    %19 = vsyncpa [#allocation8], 0
    %20 = vsyncpa [#allocation11], 0
    // Predicated region
    $region2: #{gawkan_forward_pallas.1} parent=1 // pred_check
      _
    $region3: #{gawkan_forward_pallas.1} parent=1 // pred_check_branch
      %22 = sbr.rel (0) target = $region5
    $region4: #{gawkan_forward_pallas.1} parent=1 // pred_region
      _
    $region5: #{gawkan_forward_pallas.1} parent=1 // pred_fallthru
      _
    // Predicated region
    $region6: #{gawkan_forward_pallas.1} parent=1 // pred_check
      _
    $region7: #{gawkan_forward_pallas.1} parent=1 // pred_check_branch
      %24 = sbr.rel (0) target = $region9
    $region8: #{gawkan_forward_pallas.1} parent=1 // pred_region
      %s26 = ssub.s32 128, 128
      %27 = vsyncadd [#allocation3], %s26
      %s29 = sshll.u32 [#allocation2], 4
      %s30 = int_to_ptr.vmem [resolvable:$true] %s29
      %32 = dma.hbm_to_vmem [thread:$0]  %s1, 128, %s30, [#allocation3]
    $region9: #{gawkan_forward_pallas.1} parent=1 // pred_fallthru
      _
    // Predicated region
    $region10: #{gawkan_forward_pallas.1} parent=1 // pred_check
      _
    $region11: #{gawkan_forward_pallas.1} parent=1 // pred_check_branch
      %34 = sbr.rel (0) target = $region13
    $region12: #{gawkan_forward_pallas.1} parent=1 // pred_region
      %s36 = ssub.s32 8192, 8192
      %37 = vsyncadd [#allocation5], %s36
      %s38 = sshll.u32 [#allocation4], 4
      %s39 = int_to_ptr.vmem [resolvable:$true] %s38
      %44 = dma.hbm_to_vmem [thread:$0]  %s2, 8192, %s39, [#allocation5], 512, 512, 32
    $region13: #{gawkan_forward_pallas.1} parent=1 // pred_fallthru
      _
    // Predicated region
    $region14: #{gawkan_forward_pallas.1} parent=1 // pred_check
      _
    $region15: #{gawkan_forward_pallas.1} parent=1 // pred_check_branch
      %46 = sbr.rel (0) target = $region17
    $region16: #{gawkan_forward_pallas.1} parent=1 // pred_region
      _
    $region17: #{gawkan_forward_pallas.1} parent=1 // pred_fallthru
      _
    // Predicated region
    $region18: #{gawkan_forward_pallas.1} parent=1 // pred_check
      _
    $region19: #{gawkan_forward_pallas.1} parent=1 // pred_check_branch
      %48 = sbr.rel (0) target = $region21
    $region20: #{gawkan_forward_pallas.1} parent=1 // pred_region
      %s50 = ssub.s32 1024, 1024
      %51 = vsyncadd [#allocation5], %s50
      %s52 = sshll.u32 [#allocation6], 4
      %s53 = int_to_ptr.vmem [resolvable:$true] %s52
      %58 = dma.hbm_to_vmem [thread:$0]  %s4, 1024, %s53, [#allocation5], 64, 64, 4
    $region21: #{gawkan_forward_pallas.1} parent=1 // pred_fallthru
      _
    // Predicated region
    $region22: #{gawkan_forward_pallas.1} parent=1 // pred_check
      _
    $region23: #{gawkan_forward_pallas.1} parent=1 // pred_check_branch
      %60 = sbr.rel (0) target = $region25
    $region24: #{gawkan_forward_pallas.1} parent=1 // pred_region
      _
    $region25: #{gawkan_forward_pallas.1} parent=1 // pred_fallthru
      _
    // Predicated region
    $region26: #{gawkan_forward_pallas.1} parent=1 // pred_check
      _
    $region27: #{gawkan_forward_pallas.1} parent=1 // pred_check_branch
      %62 = sbr.rel (0) target = $region29
    $region28: #{gawkan_forward_pallas.1} parent=1 // pred_region
      %s64 = ssub.s32 1024, 1024
      %65 = vsyncadd [#allocation8], %s64
      %s66 = sshll.u32 [#allocation7], 4
      %s67 = int_to_ptr.vmem [resolvable:$true] %s66
      %72 = dma.hbm_to_vmem [thread:$0]  %s6, 1024, %s67, [#allocation8], 64, 64, 4
    $region29: #{gawkan_forward_pallas.1} parent=1 // pred_fallthru
      _
    // Predicated region
    $region30: #{gawkan_forward_pallas.1} parent=1 // pred_check
      _
    $region31: #{gawkan_forward_pallas.1} parent=1 // pred_check_branch
      %74 = sbr.rel (0) target = $region33
    $region32: #{gawkan_forward_pallas.1} parent=1 // pred_region
      _
    $region33: #{gawkan_forward_pallas.1} parent=1 // pred_fallthru
      _
    // Predicated region
    $region34: #{gawkan_forward_pallas.1} parent=1 // pred_check
      _
    $region35: #{gawkan_forward_pallas.1} parent=1 // pred_check_branch
      %76 = sbr.rel (0) target = $region37
    $region36: #{gawkan_forward_pallas.1} parent=1 // pred_region
      _
    $region37: #{gawkan_forward_pallas.1} parent=1 // pred_fallthru
      _
    // Predicated region
    $region38: #{gawkan_forward_pallas.1} parent=1 // pred_check
      _
    $region39: #{gawkan_forward_pallas.1} parent=1 // pred_check_branch
      %78 = sbr.rel (0) target = $region41
    $region40: #{gawkan_forward_pallas.1} parent=1 // pred_region
      %s80 = ssub.s32 16, 16
      %81 = vsyncadd [#allocation8], %s80
      %s83 = sshll.u32 [#allocation9], 4
      %s84 = int_to_ptr.vmem [resolvable:$true] %s83
      %86 = dma.hbm_to_vmem [thread:$0]  %s9, 16, %s84, [#allocation8]
    $region41: #{gawkan_forward_pallas.1} parent=1 // pred_fallthru
      _
    // Predicated region
    $region42: #{gawkan_forward_pallas.1} parent=1 // pred_check
      _
    $region43: #{gawkan_forward_pallas.1} parent=1 // pred_check_branch
      %88 = sbr.rel (0) target = $region45
    $region44: #{gawkan_forward_pallas.1} parent=1 // pred_region
      %s90 = ssub.s32 1024, 1024
      %91 = vsyncadd [#allocation11], %s90
      %s92 = sshll.u32 [#allocation10], 4
      %s93 = int_to_ptr.vmem [resolvable:$true] %s92
      %98 = dma.hbm_to_vmem [thread:$0]  %s10, 1024, %s93, [#allocation11], 64, 64, 4
    $region45: #{gawkan_forward_pallas.1} parent=1 // pred_fallthru
      _
    // Predicated region
    $region46: #{gawkan_forward_pallas.1} parent=1 // pred_check
      _
    $region47: #{gawkan_forward_pallas.1} parent=1 // pred_check_branch
      %100 = sbr.rel (0) target = $region49
    $region48: #{gawkan_forward_pallas.1} parent=1 // pred_region
      %s102 = ssub.s32 16, 16
      %103 = vsyncadd [#allocation11], %s102
      %s105 = sshll.u32 [#allocation12], 4
      %s106 = int_to_ptr.vmem [resolvable:$true] %s105
      %108 = dma.hbm_to_vmem [thread:$0]  %s11, 16, %s106, [#allocation11]
    $region49: #{gawkan_forward_pallas.1} parent=1 // pred_fallthru
      _
    // Predicated region
    $region50: #{gawkan_forward_pallas.1} parent=1 // pred_check
      _
    $region51: #{gawkan_forward_pallas.1} parent=1 // pred_check_branch
      %110 = sbr.rel (0) target = $region53
    $region52: #{gawkan_forward_pallas.1} parent=1 // pred_region
      %111 = dma.done [#allocation3], 128
    $region53: #{gawkan_forward_pallas.1} parent=1 // pred_fallthru
      _
    // Predicated region
    $region54: #{gawkan_forward_pallas.1} parent=1 // pred_check
      _
    $region55: #{gawkan_forward_pallas.1} parent=1 // pred_check_branch
      %113 = sbr.rel (0) target = $region57
    $region56: #{gawkan_forward_pallas.1} parent=1 // pred_region
      %114 = dma.done [#allocation5], 8192
    $region57: #{gawkan_forward_pallas.1} parent=1 // pred_fallthru
      _
    // Predicated region
    $region58: #{gawkan_forward_pallas.1} parent=1 // pred_check
      _
    $region59: #{gawkan_forward_pallas.1} parent=1 // pred_check_branch
      %116 = sbr.rel (0) target = $region61
    $region60: #{gawkan_forward_pallas.1} parent=1 // pred_region
      %117 = dma.done [#allocation5], 1024
    $region61: #{gawkan_forward_pallas.1} parent=1 // pred_fallthru
      _
    // Predicated region
    $region62: #{gawkan_forward_pallas.1} parent=1 // pred_check
      _
    $region63: #{gawkan_forward_pallas.1} parent=1 // pred_check_branch
      %119 = sbr.rel (0) target = $region65
    $region64: #{gawkan_forward_pallas.1} parent=1 // pred_region
      %120 = dma.done [#allocation8], 1024
    $region65: #{gawkan_forward_pallas.1} parent=1 // pred_fallthru
      _
    // Predicated region
    $region66: #{gawkan_forward_pallas.1} parent=1 // pred_check
      _
    $region67: #{gawkan_forward_pallas.1} parent=1 // pred_check_branch
      %122 = sbr.rel (0) target = $region69
    $region68: #{gawkan_forward_pallas.1} parent=1 // pred_region
      %123 = dma.done [#allocation8], 16
    $region69: #{gawkan_forward_pallas.1} parent=1 // pred_fallthru
      _
    // Predicated region
    $region70: #{gawkan_forward_pallas.1} parent=1 // pred_check
      _
    $region71: #{gawkan_forward_pallas.1} parent=1 // pred_check_branch
      %125 = sbr.rel (0) target = $region73
    $region72: #{gawkan_forward_pallas.1} parent=1 // pred_region
      %126 = dma.done [#allocation11], 1024
    $region73: #{gawkan_forward_pallas.1} parent=1 // pred_fallthru
      _
    // Predicated region
    $region74: #{gawkan_forward_pallas.1} parent=1 // pred_check
      _
    $region75: #{gawkan_forward_pallas.1} parent=1 // pred_check_branch
      %128 = sbr.rel (0) target = $region77
    $region76: #{gawkan_forward_pallas.1} parent=1 // pred_region
      %129 = dma.done [#allocation11], 16
    $region77: #{gawkan_forward_pallas.1} parent=1 // pred_fallthru
      _
    %v131 = vld [vmem:[%s0] sm:$0xff]
    %v132 = vld [vmem:[%s0 + $0x8] sm:$0xff]
    %v133 = vld [vmem:[#allocation2] sm:$0xff]
    %v134 = vld [vmem:[#allocation4] sm:$0xff]
    %v135 = vld [vmem:[#allocation4 + $0x8] sm:$0xff]
    %v136 = vld [vmem:[#allocation4 + $0x10] sm:$0xff]
    %v137 = vld [vmem:[#allocation4 + $0x18] sm:$0xff]
    %v138 = vld [vmem:[#allocation4 + $0x20] sm:$0xff]
    %v139 = vld [vmem:[#allocation4 + $0x28] sm:$0xff]
    %v140 = vld [vmem:[#allocation4 + $0x30] sm:$0xff]
    %v141 = vld [vmem:[#allocation4 + $0x38] sm:$0xff]
    %v142 = vld [vmem:[#allocation4 + $0x40] sm:$0xff]
    %v143 = vld [vmem:[#allocation4 + $0x48] sm:$0xff]
    %v144 = vld [vmem:[#allocation4 + $0x50] sm:$0xff]
    %v145 = vld [vmem:[#allocation4 + $0x58] sm:$0xff]
    %v146 = vld [vmem:[#allocation4 + $0x60] sm:$0xff]
    %v147 = vld [vmem:[#allocation4 + $0x68] sm:$0xff]
    %v148 = vld [vmem:[#allocation4 + $0x70] sm:$0xff]
    %v149 = vld [vmem:[#allocation4 + $0x78] sm:$0xff]
    %v150 = vld [vmem:[#allocation4 + $0x80] sm:$0xff]
    %v151 = vld [vmem:[#allocation4 + $0x88] sm:$0xff]
    %v152 = vld [vmem:[#allocation4 + $0x90] sm:$0xff]
    %v153 = vld [vmem:[#allocation4 + $0x98] sm:$0xff]
    %v154 = vld [vmem:[#allocation4 + $0xa0] sm:$0xff]
    %v155 = vld [vmem:[#allocation4 + $0xa8] sm:$0xff]
    %v156 = vld [vmem:[#allocation4 + $0xb0] sm:$0xff]
    %v157 = vld [vmem:[#allocation4 + $0xb8] sm:$0xff]
    %v158 = vld [vmem:[#allocation4 + $0xc0] sm:$0xff]
    %v159 = vld [vmem:[#allocation4 + $0xc8] sm:$0xff]
    %v160 = vld [vmem:[#allocation4 + $0xd0] sm:$0xff]
    %v161 = vld [vmem:[#allocation4 + $0xd8] sm:$0xff]
    %v162 = vld [vmem:[#allocation4 + $0xe0] sm:$0xff]
    %v163 = vld [vmem:[#allocation4 + $0xe8] sm:$0xff]
    %v164 = vld [vmem:[#allocation4 + $0xf0] sm:$0xff]
    %v165 = vld [vmem:[#allocation4 + $0xf8] sm:$0xff]
    %v166 = vld [vmem:[#allocation4 + $0x100] sm:$0xff]
    %v167 = vld [vmem:[#allocation4 + $0x108] sm:$0xff]
    %v168 = vld [vmem:[#allocation4 + $0x110] sm:$0xff]
    %v169 = vld [vmem:[#allocation4 + $0x118] sm:$0xff]
    %v170 = vld [vmem:[#allocation4 + $0x120] sm:$0xff]
    %v171 = vld [vmem:[#allocation4 + $0x128] sm:$0xff]
    %v172 = vld [vmem:[#allocation4 + $0x130] sm:$0xff]
    %v173 = vld [vmem:[#allocation4 + $0x138] sm:$0xff]
    %v174 = vld [vmem:[#allocation4 + $0x140] sm:$0xff]
    %v175 = vld [vmem:[#allocation4 + $0x148] sm:$0xff]
    %v176 = vld [vmem:[#allocation4 + $0x150] sm:$0xff]
    %v177 = vld [vmem:[#allocation4 + $0x158] sm:$0xff]
    %v178 = vld [vmem:[#allocation4 + $0x160] sm:$0xff]
    %v179 = vld [vmem:[#allocation4 + $0x168] sm:$0xff]
    %v180 = vld [vmem:[#allocation4 + $0x170] sm:$0xff]
    %v181 = vld [vmem:[#allocation4 + $0x178] sm:$0xff]
    %v182 = vld [vmem:[#allocation4 + $0x180] sm:$0xff]
    %v183 = vld [vmem:[#allocation4 + $0x188] sm:$0xff]
    %v184 = vld [vmem:[#allocation4 + $0x190] sm:$0xff]
    %v185 = vld [vmem:[#allocation4 + $0x198] sm:$0xff]
    %v186 = vld [vmem:[#allocation4 + $0x1a0] sm:$0xff]
    %v187 = vld [vmem:[#allocation4 + $0x1a8] sm:$0xff]
    %v188 = vld [vmem:[#allocation4 + $0x1b0] sm:$0xff]
    %v189 = vld [vmem:[#allocation4 + $0x1b8] sm:$0xff]
    %v190 = vld [vmem:[#allocation4 + $0x1c0] sm:$0xff]
    %v191 = vld [vmem:[#allocation4 + $0x1c8] sm:$0xff]
    %v192 = vld [vmem:[#allocation4 + $0x1d0] sm:$0xff]
    %v193 = vld [vmem:[#allocation4 + $0x1d8] sm:$0xff]
    %v194 = vld [vmem:[#allocation4 + $0x1e0] sm:$0xff]
    %v195 = vld [vmem:[#allocation4 + $0x1e8] sm:$0xff]
    %v196 = vld [vmem:[#allocation4 + $0x1f0] sm:$0xff]
    %v197 = vld [vmem:[#allocation4 + $0x1f8] sm:$0xff]
    %v198 = vld [vmem:[%s3] sm:$0xf]
    %v200 = vlaneseq
    %v201 = vshrl.u32 %v200, 7
    %v202 = vsub.s32 0, %v201
    %v203 = vrot.slane %v198, %v202
    %v204 = vlaneseq
    %v205 = vshrl.u32 %v204, 7
    %v206 = vsub.s32 2, %v205
    %v207 = vrot.slane %v198, %v206
    %v208 = vlaneseq
    %v209 = vshrl.u32 %v208, 7
    %v210 = vsub.s32 3, %v209
    %v211 = vrot.slane %v198, %v210
    %215 = vmatprep.subr.mxu0 %v135
    %216 = vmatpush1.msra.mxu0 %v134
    %217 = vmatprep.subr.mxu0 %v139
    %218 = vmatpush1.msra.mxu0 %v138
    %219 = vmatprep.subr.mxu0 %v143
    %220 = vmatpush1.msra.mxu0 %v142
    %221 = vmatprep.subr.mxu0 %v147
    %222 = vmatpush1.msra.mxu0 %v146
    %223 = vmatprep.subr.mxu0 %v151
    %224 = vmatpush1.msra.mxu0 %v150
    %225 = vmatprep.subr.mxu0 %v155
    %226 = vmatpush1.msra.mxu0 %v154
    %227 = vmatprep.subr.mxu0 %v159
    %228 = vmatpush1.msra.mxu0 %v158
    %229 = vmatprep.subr.mxu0 %v163
    %230 = vmatpush1.msra.mxu0 %v162
    %231 = vmatprep.subr.mxu0 %v167
    %232 = vmatpush1.msra.mxu0 %v166
    %233 = vmatprep.subr.mxu0 %v171
    %234 = vmatpush1.msra.mxu0 %v170
    %235 = vmatprep.subr.mxu0 %v175
    %236 = vmatpush1.msra.mxu0 %v174
    %237 = vmatprep.subr.mxu0 %v179
    %238 = vmatpush1.msra.mxu0 %v178
    %239 = vmatprep.subr.mxu0 %v183
    %240 = vmatpush1.msra.mxu0 %v182
    %241 = vmatprep.subr.mxu0 %v187
    %242 = vmatpush1.msra.mxu0 %v186
    %243 = vmatprep.subr.mxu0 %v191
    %244 = vmatpush1.msra.mxu0 %v190
    %245 = vmatprep.subr.mxu0 %v195
    %246 = vmatpush1.msra.mxu0 %v194
    %247 = vmatprep.subr.mxu0 0.0
    %248 = vmatpush1.msra.mxu0 0.0
    %249 = vmatprep.subr.mxu0 0.0
    %250 = vmatpush1.msra.mxu0 0.0
    %251 = vmatprep.subr.mxu0 0.0
    %252 = vmatpush1.msra.mxu0 0.0
    %253 = vmatprep.subr.mxu0 0.0
    %254 = vmatpush1.msra.mxu0 0.0
    %255 = vmatprep.subr.mxu0 0.0
    %256 = vmatpush1.msra.mxu0 0.0
    %257 = vmatprep.subr.mxu0 0.0
    %258 = vmatpush1.msra.mxu0 0.0
    %259 = vmatprep.subr.mxu0 0.0
    %260 = vmatpush1.msra.mxu0 0.0
    %261 = vmatprep.subr.mxu0 0.0
    %262 = vmatpush1.msra.mxu0 0.0
    %263 = vmatprep.subr.mxu0 0.0
    %264 = vmatpush1.msra.mxu0 0.0
    %265 = vmatprep.subr.mxu0 0.0
    %266 = vmatpush1.msra.mxu0 0.0
    %267 = vmatprep.subr.mxu0 0.0
    %268 = vmatpush1.msra.mxu0 0.0
    %269 = vmatprep.subr.mxu0 0.0
    %270 = vmatpush1.msra.mxu0 0.0
    %271 = vmatprep.subr.mxu0 0.0
    %272 = vmatpush1.msra.mxu0 0.0
    %273 = vmatprep.subr.mxu0 0.0
    %274 = vmatpush1.msra.mxu0 0.0
    %275 = vmatprep.subr.mxu0 0.0
    %276 = vmatpush1.msra.mxu0 0.0
    %277 = vmatprep.subr.mxu0 0.0
    %278 = vmatpush1.msra.mxu0 0.0
    %279 = vmatprep.mubr.f32.mxu0 0.0
    %280 = vmatmul.mubr.f32.gmra.mrb[0].mxu0 %v131
    %v281 = vpop.f32.mrb[0].mxu0
    %v282 = vadd.f32 %v203, %v281
    %v283 = vpop.f32.mrb[0].mxu0
    %284 = vmatprep.mubr.f32.mxu0 0.0
    %285 = vmatmul.mubr.f32.gmra.mrb[0].mxu0 %v132
    %v286 = vpop.f32.mrb[0].mxu0
    %v287 = vadd.f32 %v203, %v286
    %v288 = vpop.f32.mrb[0].mxu0
    %289 = vdwg.mxu0
    %290 = vmatprep.subr.mxu0 %v137
    %291 = vmatpush1.msra.mxu0 %v136
    %292 = vmatprep.subr.mxu0 %v141
    %293 = vmatpush1.msra.mxu0 %v140
    %294 = vmatprep.subr.mxu0 %v145
    %295 = vmatpush1.msra.mxu0 %v144
    %296 = vmatprep.subr.mxu0 %v149
    %297 = vmatpush1.msra.mxu0 %v148
    %298 = vmatprep.subr.mxu0 %v153
    %299 = vmatpush1.msra.mxu0 %v152
    %300 = vmatprep.subr.mxu0 %v157
    %301 = vmatpush1.msra.mxu0 %v156
    %302 = vmatprep.subr.mxu0 %v161
    %303 = vmatpush1.msra.mxu0 %v160
    %304 = vmatprep.subr.mxu0 %v165
    %305 = vmatpush1.msra.mxu0 %v164
    %306 = vmatprep.subr.mxu0 %v169
    %307 = vmatpush1.msra.mxu0 %v168
    %308 = vmatprep.subr.mxu0 %v173
    %309 = vmatpush1.msra.mxu0 %v172
    %310 = vmatprep.subr.mxu0 %v177
    %311 = vmatpush1.msra.mxu0 %v176
    %312 = vmatprep.subr.mxu0 %v181
    %313 = vmatpush1.msra.mxu0 %v180
    %314 = vmatprep.subr.mxu0 %v185
    %315 = vmatpush1.msra.mxu0 %v184
    %316 = vmatprep.subr.mxu0 %v189
    %317 = vmatpush1.msra.mxu0 %v188
    %318 = vmatprep.subr.mxu0 %v193
    %319 = vmatpush1.msra.mxu0 %v192
    %320 = vmatprep.subr.mxu0 %v197
    %321 = vmatpush1.msra.mxu0 %v196
    %322 = vmatprep.subr.mxu0 0.0
    %323 = vmatpush1.msra.mxu0 0.0
    %324 = vmatprep.subr.mxu0 0.0
    %325 = vmatpush1.msra.mxu0 0.0
    %326 = vmatprep.subr.mxu0 0.0
    %327 = vmatpush1.msra.mxu0 0.0
    %328 = vmatprep.subr.mxu0 0.0
    %329 = vmatpush1.msra.mxu0 0.0
    %330 = vmatprep.subr.mxu0 0.0
    %331 = vmatpush1.msra.mxu0 0.0
    %332 = vmatprep.subr.mxu0 0.0
    %333 = vmatpush1.msra.mxu0 0.0
    %334 = vmatprep.subr.mxu0 0.0
    %335 = vmatpush1.msra.mxu0 0.0
    %336 = vmatprep.subr.mxu0 0.0
    %337 = vmatpush1.msra.mxu0 0.0
    %338 = vmatprep.subr.mxu0 0.0
    %339 = vmatpush1.msra.mxu0 0.0
    %340 = vmatprep.subr.mxu0 0.0
    %341 = vmatpush1.msra.mxu0 0.0
    %342 = vmatprep.subr.mxu0 0.0
    %343 = vmatpush1.msra.mxu0 0.0
    %344 = vmatprep.subr.mxu0 0.0
    %345 = vmatpush1.msra.mxu0 0.0
    %346 = vmatprep.subr.mxu0 0.0
    %347 = vmatpush1.msra.mxu0 0.0
    %348 = vmatprep.subr.mxu0 0.0
    %349 = vmatpush1.msra.mxu0 0.0
    %350 = vmatprep.subr.mxu0 0.0
    %351 = vmatpush1.msra.mxu0 0.0
    %352 = vmatprep.subr.mxu0 0.0
    %353 = vmatpush1.msra.mxu0 0.0
    %354 = vmatprep.mubr.f32.mxu0 0.0
    %355 = vmatmul.mubr.f32.gmra.mrb[0].mxu0 %v131
    %v356 = vpop.f32.mrb[0].mxu0
    %v357 = vadd.f32 %v207, %v356
    %v358 = vpop.f32.mrb[0].mxu0
    %v359 = vadd.f32 %v211, %v358
    %360 = vmatprep.mubr.f32.mxu0 0.0
    %361 = vmatmul.mubr.f32.gmra.mrb[0].mxu0 %v132
    %v362 = vpop.f32.mrb[0].mxu0
    %v363 = vadd.f32 %v207, %v362
    %v364 = vpop.f32.mrb[0].mxu0
    %v365 = vadd.f32 %v211, %v364
    %366 = vdwg.mxu0
    %vm367 = vcmask 64512
    %v369 = vsel %vm367, %v133, 0
    %371 = vmatprep.subr.mxu0 0.0
    %372 = vmatpush1.msra.mxu0 %v131
    %373 = vmatprep.subr.mxu0 0.0
    %374 = vmatpush1.msra.mxu0 0.0
    %375 = vmatprep.subr.mxu0 0.0
    %376 = vmatpush1.msra.mxu0 0.0
    %377 = vmatprep.subr.mxu0 0.0
    %378 = vmatpush1.msra.mxu0 0.0
    %379 = vmatprep.subr.mxu0 0.0
    %380 = vmatpush1.msra.mxu0 0.0
    %381 = vmatprep.subr.mxu0 0.0
    %382 = vmatpush1.msra.mxu0 0.0
    %383 = vmatprep.subr.mxu0 0.0
    %384 = vmatpush1.msra.mxu0 0.0
    %385 = vmatprep.subr.mxu0 0.0
    %386 = vmatpush1.msra.mxu0 0.0
    %387 = vmatprep.subr.mxu0 0.0
    %388 = vmatpush1.msra.mxu0 0.0
    %389 = vmatprep.subr.mxu0 0.0
    %390 = vmatpush1.msra.mxu0 0.0
    %391 = vmatprep.subr.mxu0 0.0
    %392 = vmatpush1.msra.mxu0 0.0
    %393 = vmatprep.subr.mxu0 0.0
    %394 = vmatpush1.msra.mxu0 0.0
    %395 = vmatprep.subr.mxu0 0.0
    %396 = vmatpush1.msra.mxu0 0.0
    %397 = vmatprep.subr.mxu0 0.0
    %398 = vmatpush1.msra.mxu0 0.0
    %399 = vmatprep.subr.mxu0 0.0
    %400 = vmatpush1.msra.mxu0 0.0
    %401 = vmatprep.subr.mxu0 0.0
    %402 = vmatpush1.msra.mxu0 0.0
    %403 = vmatprep.subr.mxu0 0.0
    %404 = vmatpush1.msra.mxu0 0.0
    %405 = vmatprep.subr.mxu0 0.0
    %406 = vmatpush1.msra.mxu0 0.0
    %407 = vmatprep.subr.mxu0 0.0
    %408 = vmatpush1.msra.mxu0 0.0
    %409 = vmatprep.subr.mxu0 0.0
    %410 = vmatpush1.msra.mxu0 0.0
    %411 = vmatprep.subr.mxu0 0.0
    %412 = vmatpush1.msra.mxu0 0.0
    %413 = vmatprep.subr.mxu0 0.0
    %414 = vmatpush1.msra.mxu0 0.0
    %415 = vmatprep.subr.mxu0 0.0
    %416 = vmatpush1.msra.mxu0 0.0
    %417 = vmatprep.subr.mxu0 0.0
    %418 = vmatpush1.msra.mxu0 0.0
    %419 = vmatprep.subr.mxu0 0.0
    %420 = vmatpush1.msra.mxu0 0.0
    %421 = vmatprep.subr.mxu0 0.0
    %422 = vmatpush1.msra.mxu0 0.0
    %423 = vmatprep.subr.mxu0 0.0
    %424 = vmatpush1.msra.mxu0 0.0
    %425 = vmatprep.subr.mxu0 0.0
    %426 = vmatpush1.msra.mxu0 0.0
    %427 = vmatprep.subr.mxu0 0.0
    %428 = vmatpush1.msra.mxu0 0.0
    %429 = vmatprep.subr.mxu0 0.0
    %430 = vmatpush1.msra.mxu0 0.0
    %431 = vmatprep.subr.mxu0 0.0
    %432 = vmatpush1.msra.mxu0 0.0
    %433 = vmatprep.subr.mxu0 0.0
    %434 = vmatpush1.msra.mxu0 0.0
    %435 = vmatprep.mubr.f32.mxu0 0.0
    %436 = vmatmul.mubr.f32.gmra.mrb[0].mxu0 %v369
    %v437 = vpop.f32.mrb[0].mxu0
    %v438 = vadd.f32 0.0, %v437
    %v439 = vpop.f32.mrb[0].mxu0
    %440 = vdwg.mxu0
    %441 = vmatprep.subr.mxu0 0.0
    %442 = vmatpush1.msra.mxu0 %v132
    %443 = vmatprep.subr.mxu0 0.0
    %444 = vmatpush1.msra.mxu0 0.0
    %445 = vmatprep.subr.mxu0 0.0
    %446 = vmatpush1.msra.mxu0 0.0
    %447 = vmatprep.subr.mxu0 0.0
    %448 = vmatpush1.msra.mxu0 0.0
    %449 = vmatprep.subr.mxu0 0.0
    %450 = vmatpush1.msra.mxu0 0.0
    %451 = vmatprep.subr.mxu0 0.0
    %452 = vmatpush1.msra.mxu0 0.0
    %453 = vmatprep.subr.mxu0 0.0
    %454 = vmatpush1.msra.mxu0 0.0
    %455 = vmatprep.subr.mxu0 0.0
    %456 = vmatpush1.msra.mxu0 0.0
    %457 = vmatprep.subr.mxu0 0.0
    %458 = vmatpush1.msra.mxu0 0.0
    %459 = vmatprep.subr.mxu0 0.0
    %460 = vmatpush1.msra.mxu0 0.0
    %461 = vmatprep.subr.mxu0 0.0
    %462 = vmatpush1.msra.mxu0 0.0
    %463 = vmatprep.subr.mxu0 0.0
    %464 = vmatpush1.msra.mxu0 0.0
    %465 = vmatprep.subr.mxu0 0.0
    %466 = vmatpush1.msra.mxu0 0.0
    %467 = vmatprep.subr.mxu0 0.0
    %468 = vmatpush1.msra.mxu0 0.0
    %469 = vmatprep.subr.mxu0 0.0
    %470 = vmatpush1.msra.mxu0 0.0
    %471 = vmatprep.subr.mxu0 0.0
    %472 = vmatpush1.msra.mxu0 0.0
    %473 = vmatprep.subr.mxu0 0.0
    %474 = vmatpush1.msra.mxu0 0.0
    %475 = vmatprep.subr.mxu0 0.0
    %476 = vmatpush1.msra.mxu0 0.0
    %477 = vmatprep.subr.mxu0 0.0
    %478 = vmatpush1.msra.mxu0 0.0
    %479 = vmatprep.subr.mxu0 0.0
    %480 = vmatpush1.msra.mxu0 0.0
    %481 = vmatprep.subr.mxu0 0.0
    %482 = vmatpush1.msra.mxu0 0.0
    %483 = vmatprep.subr.mxu0 0.0
    %484 = vmatpush1.msra.mxu0 0.0
    %485 = vmatprep.subr.mxu0 0.0
    %486 = vmatpush1.msra.mxu0 0.0
    %487 = vmatprep.subr.mxu0 0.0
    %488 = vmatpush1.msra.mxu0 0.0
    %489 = vmatprep.subr.mxu0 0.0
    %490 = vmatpush1.msra.mxu0 0.0
    %491 = vmatprep.subr.mxu0 0.0
    %492 = vmatpush1.msra.mxu0 0.0
    %493 = vmatprep.subr.mxu0 0.0
    %494 = vmatpush1.msra.mxu0 0.0
    %495 = vmatprep.subr.mxu0 0.0
    %496 = vmatpush1.msra.mxu0 0.0
    %497 = vmatprep.subr.mxu0 0.0
    %498 = vmatpush1.msra.mxu0 0.0
    %499 = vmatprep.subr.mxu0 0.0
    %500 = vmatpush1.msra.mxu0 0.0
    %501 = vmatprep.subr.mxu0 0.0
    %502 = vmatpush1.msra.mxu0 0.0
    %503 = vmatprep.subr.mxu0 0.0
    %504 = vmatpush1.msra.mxu0 0.0
    %505 = vmatprep.mubr.f32.mxu0 0.0
    %506 = vmatmul.mubr.f32.gmra.mrb[0].mxu0 %v369
    %v507 = vpop.f32.mrb[0].mxu0
    %v508 = vadd.f32 0.0, %v507
    %v509 = vpop.f32.mrb[0].mxu0
    %510 = vdwg.mxu0
    %v511 = vpack.c.bf16 %v508, %v438
    %v512 = vld [vmem:[#allocation6] sm:$0xf]
    %v513 = vld [vmem:[#allocation6 + $0x4] sm:$0xf]
    %v514 = vld [vmem:[#allocation6 + $0x8] sm:$0xf]
    %v515 = vld [vmem:[#allocation6 + $0xc] sm:$0xf]
    %v516 = vld [vmem:[#allocation6 + $0x10] sm:$0xf]
    %v517 = vld [vmem:[#allocation6 + $0x14] sm:$0xf]
    %v518 = vld [vmem:[#allocation6 + $0x18] sm:$0xf]
    %v519 = vld [vmem:[#allocation6 + $0x1c] sm:$0xf]
    %v520 = vld [vmem:[#allocation6 + $0x20] sm:$0xf]
    %v521 = vld [vmem:[#allocation6 + $0x24] sm:$0xf]
    %v522 = vld [vmem:[#allocation6 + $0x28] sm:$0xf]
    %v523 = vld [vmem:[#allocation6 + $0x2c] sm:$0xf]
    %v524 = vld [vmem:[#allocation6 + $0x30] sm:$0xf]
    %v525 = vld [vmem:[#allocation6 + $0x34] sm:$0xf]
    %v526 = vld [vmem:[#allocation6 + $0x38] sm:$0xf]
    %v527 = vld [vmem:[#allocation6 + $0x3c] sm:$0xf]
    %v528 = vld [vmem:[%s5] sm:$0x1]
    %v530 = vlaneseq
    %v531 = vshrl.u32 %v530, 7
    %v532 = vsub.s32 0, %v531
    %v533 = vrot.slane %v528, %v532
    %v551 = vunpack.c.l.b16 %v512
    %v552 = vunpack.c.l.b16 %v513
    %v553 = vunpack.c.l.b16 %v514
    %v554 = vunpack.c.l.b16 %v515
    %v555 = vunpack.c.l.b16 %v516
    %v556 = vunpack.c.l.b16 %v517
    %v557 = vunpack.c.l.b16 %v518
    %v558 = vunpack.c.l.b16 %v519
    %v559 = vunpack.c.l.b16 %v520
    %v560 = vunpack.c.l.b16 %v521
    %v561 = vunpack.c.l.b16 %v522
    %v562 = vunpack.c.l.b16 %v523
    %v563 = vunpack.c.l.b16 %v524
    %v564 = vunpack.c.l.b16 %v525
    %v565 = vunpack.c.l.b16 %v526
    %v566 = vunpack.c.l.b16 %v527
    %v567 = vpack.c.b16 %v552, %v551
    %v568 = vpack.c.b16 %v554, %v553
    %v569 = vpack.c.b16 %v556, %v555
    %v570 = vpack.c.b16 %v558, %v557
    %v571 = vpack.c.b16 %v560, %v559
    %v572 = vpack.c.b16 %v562, %v561
    %v573 = vpack.c.b16 %v564, %v563
    %v574 = vpack.c.b16 %v566, %v565
    %583 = vmatprep.subr.bf16.mxu0 0
    %584 = vmatpush1.bf16.msra.mxu0 %v567
    %585 = vmatprep.subr.bf16.mxu0 0
    %586 = vmatpush1.bf16.msra.mxu0 %v568
    %587 = vmatprep.subr.bf16.mxu0 0
    %588 = vmatpush1.bf16.msra.mxu0 %v569
    %589 = vmatprep.subr.bf16.mxu0 0
    %590 = vmatpush1.bf16.msra.mxu0 %v570
    %591 = vmatprep.subr.bf16.mxu0 0
    %592 = vmatpush1.bf16.msra.mxu0 %v571
    %593 = vmatprep.subr.bf16.mxu0 0
    %594 = vmatpush1.bf16.msra.mxu0 %v572
    %595 = vmatprep.subr.bf16.mxu0 0
    %596 = vmatpush1.bf16.msra.mxu0 %v573
    %597 = vmatprep.subr.bf16.mxu0 0
    %598 = vmatpush1.bf16.msra.mxu0 %v574
    %599 = vmatprep.subr.bf16.mxu0 0
    %600 = vmatpush1.bf16.msra.mxu0 0
    %601 = vmatprep.subr.bf16.mxu0 0
    %602 = vmatpush1.bf16.msra.mxu0 0
    %603 = vmatprep.subr.bf16.mxu0 0
    %604 = vmatpush1.bf16.msra.mxu0 0
    %605 = vmatprep.subr.bf16.mxu0 0
    %606 = vmatpush1.bf16.msra.mxu0 0
    %607 = vmatprep.subr.bf16.mxu0 0
    %608 = vmatpush1.bf16.msra.mxu0 0
    %609 = vmatprep.subr.bf16.mxu0 0
    %610 = vmatpush1.bf16.msra.mxu0 0
    %611 = vmatprep.subr.bf16.mxu0 0
    %612 = vmatpush1.bf16.msra.mxu0 0
    %613 = vmatprep.subr.bf16.mxu0 0
    %614 = vmatpush1.bf16.msra.mxu0 0
    %615 = vmatprep.mubr.bf16.mxu0 0
    %616 = vmatmul.mubr.bf16.gmra.mrb[0].mxu0 %v511
    %v617 = vpop.f32.mrb[0].mxu0
    %v618 = vadd.f32 %v533, %v617
    %v619 = vpop.f32.mrb[0].mxu0
    %v620 = vpop.f32.mrb[0].mxu0
    %v621 = vadd.f32 %v533, %v620
    %v622 = vpop.f32.mrb[0].mxu0
    %623 = vdwg.mxu0
    %v624 = vsub.f32 %v618, %v282
    %v625 = vsub.f32 %v621, %v287
    %v626 = vmul.f32 %v624, %v624
    %v627 = vmul.f32 %v625, %v625
    %v628 = vadd.f32 %v626, %v627
    %629 = vadd.xlane.f32.xlu0 %v628
    %v630 = vpop.xlane.xlu0 %629
    %v631 = vrot.slane %v630, 4
    %v632 = vadd.f32 %v630, %v631
    %v633 = vrot.slane %v632, 2
    %v634 = vadd.f32 %v632, %v633
    %v635 = vrot.slane %v634, 1
    %v636 = vadd.f32 %v634, %v635
    %s637 = vtos %v636
    %s638 = smul.f32 %s637, 0.001953125
    %s639 = sxor.u32 %s638, 2147483648
    %v640 = vstv %s639
    %v641 = vmul.f32 %v640, 1.442695
    %v642 = vpow.pop %v641
    %s643 = vtos %v642
    %s644 = sadd.f32 %s643, 1.0
    %v645 = vstv %s644
    %v646 = vrcp.pop %v645
    %s647 = vtos %v646
    %v648 = vstv %s647
    %v649 = vmul.f32 %v648, %v624
    %v650 = vmul.f32 %v648, %v625
    %v651 = vadd.f32 %v282, %v649
    %v652 = vadd.f32 %v287, %v650
    %653 = vmatprep.subr.mxu0 0.0
    %654 = vmatpush1.msra.mxu0 %v651
    %655 = vmatprep.subr.mxu0 0.0
    %656 = vmatpush1.msra.mxu0 0.0
    %657 = vmatprep.subr.mxu0 0.0
    %658 = vmatpush1.msra.mxu0 0.0
    %659 = vmatprep.subr.mxu0 0.0
    %660 = vmatpush1.msra.mxu0 0.0
    %661 = vmatprep.subr.mxu0 0.0
    %662 = vmatpush1.msra.mxu0 0.0
    %663 = vmatprep.subr.mxu0 0.0
    %664 = vmatpush1.msra.mxu0 0.0
    %665 = vmatprep.subr.mxu0 0.0
    %666 = vmatpush1.msra.mxu0 0.0
    %667 = vmatprep.subr.mxu0 0.0
    %668 = vmatpush1.msra.mxu0 0.0
    %669 = vmatprep.subr.mxu0 0.0
    %670 = vmatpush1.msra.mxu0 0.0
    %671 = vmatprep.subr.mxu0 0.0
    %672 = vmatpush1.msra.mxu0 0.0
    %673 = vmatprep.subr.mxu0 0.0
    %674 = vmatpush1.msra.mxu0 0.0
    %675 = vmatprep.subr.mxu0 0.0
    %676 = vmatpush1.msra.mxu0 0.0
    %677 = vmatprep.subr.mxu0 0.0
    %678 = vmatpush1.msra.mxu0 0.0
    %679 = vmatprep.subr.mxu0 0.0
    %680 = vmatpush1.msra.mxu0 0.0
    %681 = vmatprep.subr.mxu0 0.0
    %682 = vmatpush1.msra.mxu0 0.0
    %683 = vmatprep.subr.mxu0 0.0
    %684 = vmatpush1.msra.mxu0 0.0
    %685 = vmatprep.subr.mxu0 0.0
    %686 = vmatpush1.msra.mxu0 0.0
    %687 = vmatprep.subr.mxu0 0.0
    %688 = vmatpush1.msra.mxu0 0.0
    %689 = vmatprep.subr.mxu0 0.0
    %690 = vmatpush1.msra.mxu0 0.0
    %691 = vmatprep.subr.mxu0 0.0
    %692 = vmatpush1.msra.mxu0 0.0
    %693 = vmatprep.subr.mxu0 0.0
    %694 = vmatpush1.msra.mxu0 0.0
    %695 = vmatprep.subr.mxu0 0.0
    %696 = vmatpush1.msra.mxu0 0.0
    %697 = vmatprep.subr.mxu0 0.0
    %698 = vmatpush1.msra.mxu0 0.0
    %699 = vmatprep.subr.mxu0 0.0
    %700 = vmatpush1.msra.mxu0 0.0
    %701 = vmatprep.subr.mxu0 0.0
    %702 = vmatpush1.msra.mxu0 0.0
    %703 = vmatprep.subr.mxu0 0.0
    %704 = vmatpush1.msra.mxu0 0.0
    %705 = vmatprep.subr.mxu0 0.0
    %706 = vmatpush1.msra.mxu0 0.0
    %707 = vmatprep.subr.mxu0 0.0
    %708 = vmatpush1.msra.mxu0 0.0
    %709 = vmatprep.subr.mxu0 0.0
    %710 = vmatpush1.msra.mxu0 0.0
    %711 = vmatprep.subr.mxu0 0.0
    %712 = vmatpush1.msra.mxu0 0.0
    %713 = vmatprep.subr.mxu0 0.0
    %714 = vmatpush1.msra.mxu0 0.0
    %715 = vmatprep.subr.mxu0 0.0
    %716 = vmatpush1.msra.mxu0 0.0
    %717 = vmatprep.mubr.f32.mxu0 0.0
    %718 = vmatmul.mubr.f32.gmra.mrb[0].mxu0 %v369
    %v719 = vpop.f32.mrb[0].mxu0
    %v720 = vadd.f32 0.0, %v719
    %v721 = vpop.f32.mrb[0].mxu0
    %722 = vdwg.mxu0
    %723 = vmatprep.subr.mxu0 0.0
    %724 = vmatpush1.msra.mxu0 %v652
    %725 = vmatprep.subr.mxu0 0.0
    %726 = vmatpush1.msra.mxu0 0.0
    %727 = vmatprep.subr.mxu0 0.0
    %728 = vmatpush1.msra.mxu0 0.0
    %729 = vmatprep.subr.mxu0 0.0
    %730 = vmatpush1.msra.mxu0 0.0
    %731 = vmatprep.subr.mxu0 0.0
    %732 = vmatpush1.msra.mxu0 0.0
    %733 = vmatprep.subr.mxu0 0.0
    %734 = vmatpush1.msra.mxu0 0.0
    %735 = vmatprep.subr.mxu0 0.0
    %736 = vmatpush1.msra.mxu0 0.0
    %737 = vmatprep.subr.mxu0 0.0
    %738 = vmatpush1.msra.mxu0 0.0
    %739 = vmatprep.subr.mxu0 0.0
    %740 = vmatpush1.msra.mxu0 0.0
    %741 = vmatprep.subr.mxu0 0.0
    %742 = vmatpush1.msra.mxu0 0.0
    %743 = vmatprep.subr.mxu0 0.0
    %744 = vmatpush1.msra.mxu0 0.0
    %745 = vmatprep.subr.mxu0 0.0
    %746 = vmatpush1.msra.mxu0 0.0
    %747 = vmatprep.subr.mxu0 0.0
    %748 = vmatpush1.msra.mxu0 0.0
    %749 = vmatprep.subr.mxu0 0.0
    %750 = vmatpush1.msra.mxu0 0.0
    %751 = vmatprep.subr.mxu0 0.0
    %752 = vmatpush1.msra.mxu0 0.0
    %753 = vmatprep.subr.mxu0 0.0
    %754 = vmatpush1.msra.mxu0 0.0
    %755 = vmatprep.subr.mxu0 0.0
    %756 = vmatpush1.msra.mxu0 0.0
    %757 = vmatprep.subr.mxu0 0.0
    %758 = vmatpush1.msra.mxu0 0.0
    %759 = vmatprep.subr.mxu0 0.0
    %760 = vmatpush1.msra.mxu0 0.0
    %761 = vmatprep.subr.mxu0 0.0
    %762 = vmatpush1.msra.mxu0 0.0
    %763 = vmatprep.subr.mxu0 0.0
    %764 = vmatpush1.msra.mxu0 0.0
    %765 = vmatprep.subr.mxu0 0.0
    %766 = vmatpush1.msra.mxu0 0.0
    %767 = vmatprep.subr.mxu0 0.0
    %768 = vmatpush1.msra.mxu0 0.0
    %769 = vmatprep.subr.mxu0 0.0
    %770 = vmatpush1.msra.mxu0 0.0
    %771 = vmatprep.subr.mxu0 0.0
    %772 = vmatpush1.msra.mxu0 0.0
    %773 = vmatprep.subr.mxu0 0.0
    %774 = vmatpush1.msra.mxu0 0.0
    %775 = vmatprep.subr.mxu0 0.0
    %776 = vmatpush1.msra.mxu0 0.0
    %777 = vmatprep.subr.mxu0 0.0
    %778 = vmatpush1.msra.mxu0 0.0
    %779 = vmatprep.subr.mxu0 0.0
    %780 = vmatpush1.msra.mxu0 0.0
    %781 = vmatprep.subr.mxu0 0.0
    %782 = vmatpush1.msra.mxu0 0.0
    %783 = vmatprep.subr.mxu0 0.0
    %784 = vmatpush1.msra.mxu0 0.0
    %785 = vmatprep.subr.mxu0 0.0
    %786 = vmatpush1.msra.mxu0 0.0
    %787 = vmatprep.mubr.f32.mxu0 0.0
    %788 = vmatmul.mubr.f32.gmra.mrb[0].mxu0 %v369
    %v789 = vpop.f32.mrb[0].mxu0
    %v790 = vadd.f32 0.0, %v789
    %v791 = vpop.f32.mrb[0].mxu0
    %792 = vdwg.mxu0
    %v793 = vpack.c.bf16 %v790, %v720
    %v794 = vld [vmem:[%s8] sm:$0xf]
    %v795 = vld [vmem:[%s8 + $0x4] sm:$0xf]
    %v796 = vld [vmem:[%s8 + $0x8] sm:$0xf]
    %v797 = vld [vmem:[%s8 + $0xc] sm:$0xf]
    %v798 = vld [vmem:[%s8 + $0x10] sm:$0xf]
    %v799 = vld [vmem:[%s8 + $0x14] sm:$0xf]
    %v800 = vld [vmem:[%s8 + $0x18] sm:$0xf]
    %v801 = vld [vmem:[%s8 + $0x1c] sm:$0xf]
    %v802 = vld [vmem:[%s8 + $0x20] sm:$0xf]
    %v803 = vld [vmem:[%s8 + $0x24] sm:$0xf]
    %v804 = vld [vmem:[%s8 + $0x28] sm:$0xf]
    %v805 = vld [vmem:[%s8 + $0x2c] sm:$0xf]
    %v806 = vld [vmem:[%s8 + $0x30] sm:$0xf]
    %v807 = vld [vmem:[%s8 + $0x34] sm:$0xf]
    %v808 = vld [vmem:[%s8 + $0x38] sm:$0xf]
    %v809 = vld [vmem:[%s8 + $0x3c] sm:$0xf]
    %v810 = vld [vmem:[#allocation9] sm:$0x1]
    %v812 = vlaneseq
    %v813 = vshrl.u32 %v812, 7
    %v814 = vsub.s32 0, %v813
    %v815 = vrot.slane %v810, %v814
    %v833 = vunpack.c.l.b16 %v794
    %v834 = vunpack.c.l.b16 %v795
    %v835 = vunpack.c.l.b16 %v796
    %v836 = vunpack.c.l.b16 %v797
    %v837 = vunpack.c.l.b16 %v798
    %v838 = vunpack.c.l.b16 %v799
    %v839 = vunpack.c.l.b16 %v800
    %v840 = vunpack.c.l.b16 %v801
    %v841 = vunpack.c.l.b16 %v802
    %v842 = vunpack.c.l.b16 %v803
    %v843 = vunpack.c.l.b16 %v804
    %v844 = vunpack.c.l.b16 %v805
    %v845 = vunpack.c.l.b16 %v806
    %v846 = vunpack.c.l.b16 %v807
    %v847 = vunpack.c.l.b16 %v808
    %v848 = vunpack.c.l.b16 %v809
    %v849 = vpack.c.b16 %v834, %v833
    %v850 = vpack.c.b16 %v836, %v835
    %v851 = vpack.c.b16 %v838, %v837
    %v852 = vpack.c.b16 %v840, %v839
    %v853 = vpack.c.b16 %v842, %v841
    %v854 = vpack.c.b16 %v844, %v843
    %v855 = vpack.c.b16 %v846, %v845
    %v856 = vpack.c.b16 %v848, %v847
    %865 = vmatprep.subr.bf16.mxu0 0
    %866 = vmatpush1.bf16.msra.mxu0 %v849
    %867 = vmatprep.subr.bf16.mxu0 0
    %868 = vmatpush1.bf16.msra.mxu0 %v850
    %869 = vmatprep.subr.bf16.mxu0 0
    %870 = vmatpush1.bf16.msra.mxu0 %v851
    %871 = vmatprep.subr.bf16.mxu0 0
    %872 = vmatpush1.bf16.msra.mxu0 %v852
    %873 = vmatprep.subr.bf16.mxu0 0
    %874 = vmatpush1.bf16.msra.mxu0 %v853
    %875 = vmatprep.subr.bf16.mxu0 0
    %876 = vmatpush1.bf16.msra.mxu0 %v854
    %877 = vmatprep.subr.bf16.mxu0 0
    %878 = vmatpush1.bf16.msra.mxu0 %v855
    %879 = vmatprep.subr.bf16.mxu0 0
    %880 = vmatpush1.bf16.msra.mxu0 %v856
    %881 = vmatprep.subr.bf16.mxu0 0
    %882 = vmatpush1.bf16.msra.mxu0 0
    %883 = vmatprep.subr.bf16.mxu0 0
    %884 = vmatpush1.bf16.msra.mxu0 0
    %885 = vmatprep.subr.bf16.mxu0 0
    %886 = vmatpush1.bf16.msra.mxu0 0
    %887 = vmatprep.subr.bf16.mxu0 0
    %888 = vmatpush1.bf16.msra.mxu0 0
    %889 = vmatprep.subr.bf16.mxu0 0
    %890 = vmatpush1.bf16.msra.mxu0 0
    %891 = vmatprep.subr.bf16.mxu0 0
    %892 = vmatpush1.bf16.msra.mxu0 0
    %893 = vmatprep.subr.bf16.mxu0 0
    %894 = vmatpush1.bf16.msra.mxu0 0
    %895 = vmatprep.subr.bf16.mxu0 0
    %896 = vmatpush1.bf16.msra.mxu0 0
    %897 = vmatprep.mubr.bf16.mxu0 0
    %898 = vmatmul.mubr.bf16.gmra.mrb[0].mxu0 %v793
    %v899 = vpop.f32.mrb[0].mxu0
    %v900 = vadd.f32 %v815, %v899
    %v901 = vpop.f32.mrb[0].mxu0
    %v902 = vpop.f32.mrb[0].mxu0
    %v903 = vadd.f32 %v815, %v902
    %v904 = vpop.f32.mrb[0].mxu0
    %905 = vdwg.mxu0
    %v906 = vadd.f32 %v900, %v651
    %v907 = vadd.f32 %v903, %v652
    %v908 = vsub.f32 %v906, %v357
    %v909 = vsub.f32 %v907, %v363
    %v910 = vmul.f32 %v908, %v908
    %v911 = vmul.f32 %v909, %v909
    %v912 = vadd.f32 %v910, %v911
    %913 = vadd.xlane.f32.xlu0 %v912
    %v914 = vpop.xlane.xlu0 %913
    %v915 = vrot.slane %v914, 4
    %v916 = vadd.f32 %v914, %v915
    %v917 = vrot.slane %v916, 2
    %v918 = vadd.f32 %v916, %v917
    %v919 = vrot.slane %v918, 1
    %v920 = vadd.f32 %v918, %v919
    %s921 = vtos %v920
    %s922 = smul.f32 %s921, 0.001953125
    %s923 = sxor.u32 %s922, 2147483648
    %v924 = vstv %s923
    %v925 = vmul.f32 %v924, 1.442695
    %v926 = vpow.pop %v925
    %s927 = vtos %v926
    %s928 = sadd.f32 %s927, 1.0
    %v929 = vstv %s928
    %v930 = vrcp.pop %v929
    %s931 = vtos %v930
    %v932 = vstv %s931
    %v933 = vmul.f32 %v932, %v908
    %v934 = vmul.f32 %v932, %v909
    %v935 = vadd.f32 %v357, %v933
    %v936 = vadd.f32 %v363, %v934
    %v937 = vpack.c.bf16 %v936, %v935
    %v938 = vld [vmem:[#allocation10] sm:$0xf]
    %v939 = vld [vmem:[#allocation10 + $0x4] sm:$0xf]
    %v940 = vld [vmem:[#allocation10 + $0x8] sm:$0xf]
    %v941 = vld [vmem:[#allocation10 + $0xc] sm:$0xf]
    %v942 = vld [vmem:[#allocation10 + $0x10] sm:$0xf]
    %v943 = vld [vmem:[#allocation10 + $0x14] sm:$0xf]
    %v944 = vld [vmem:[#allocation10 + $0x18] sm:$0xf]
    %v945 = vld [vmem:[#allocation10 + $0x1c] sm:$0xf]
    %v946 = vld [vmem:[#allocation10 + $0x20] sm:$0xf]
    %v947 = vld [vmem:[#allocation10 + $0x24] sm:$0xf]
    %v948 = vld [vmem:[#allocation10 + $0x28] sm:$0xf]
    %v949 = vld [vmem:[#allocation10 + $0x2c] sm:$0xf]
    %v950 = vld [vmem:[#allocation10 + $0x30] sm:$0xf]
    %v951 = vld [vmem:[#allocation10 + $0x34] sm:$0xf]
    %v952 = vld [vmem:[#allocation10 + $0x38] sm:$0xf]
    %v953 = vld [vmem:[#allocation10 + $0x3c] sm:$0xf]
    %v954 = vld [vmem:[#allocation12] sm:$0x1]
    %v956 = vlaneseq
    %v957 = vshrl.u32 %v956, 7
    %v958 = vsub.s32 0, %v957
    %v959 = vrot.slane %v954, %v958
    %v977 = vunpack.c.l.b16 %v938
    %v978 = vunpack.c.l.b16 %v939
    %v979 = vunpack.c.l.b16 %v940
    %v980 = vunpack.c.l.b16 %v941
    %v981 = vunpack.c.l.b16 %v942
    %v982 = vunpack.c.l.b16 %v943
    %v983 = vunpack.c.l.b16 %v944
    %v984 = vunpack.c.l.b16 %v945
    %v985 = vunpack.c.l.b16 %v946
    %v986 = vunpack.c.l.b16 %v947
    %v987 = vunpack.c.l.b16 %v948
    %v988 = vunpack.c.l.b16 %v949
    %v989 = vunpack.c.l.b16 %v950
    %v990 = vunpack.c.l.b16 %v951
    %v991 = vunpack.c.l.b16 %v952
    %v992 = vunpack.c.l.b16 %v953
    %v993 = vpack.c.b16 %v978, %v977
    %v994 = vpack.c.b16 %v980, %v979
    %v995 = vpack.c.b16 %v982, %v981
    %v996 = vpack.c.b16 %v984, %v983
    %v997 = vpack.c.b16 %v986, %v985
    %v998 = vpack.c.b16 %v988, %v987
    %v999 = vpack.c.b16 %v990, %v989
    %v1000 = vpack.c.b16 %v992, %v991
    %1009 = vmatprep.subr.bf16.mxu0 0
    %1010 = vmatpush1.bf16.msra.mxu0 %v993
    %1011 = vmatprep.subr.bf16.mxu0 0
    %1012 = vmatpush1.bf16.msra.mxu0 %v994
    %1013 = vmatprep.subr.bf16.mxu0 0
    %1014 = vmatpush1.bf16.msra.mxu0 %v995
    %1015 = vmatprep.subr.bf16.mxu0 0
    %1016 = vmatpush1.bf16.msra.mxu0 %v996
    %1017 = vmatprep.subr.bf16.mxu0 0
    %1018 = vmatpush1.bf16.msra.mxu0 %v997
    %1019 = vmatprep.subr.bf16.mxu0 0
    %1020 = vmatpush1.bf16.msra.mxu0 %v998
    %1021 = vmatprep.subr.bf16.mxu0 0
    %1022 = vmatpush1.bf16.msra.mxu0 %v999
    %1023 = vmatprep.subr.bf16.mxu0 0
    %1024 = vmatpush1.bf16.msra.mxu0 %v1000
    %1025 = vmatprep.subr.bf16.mxu0 0
    %1026 = vmatpush1.bf16.msra.mxu0 0
    %1027 = vmatprep.subr.bf16.mxu0 0
    %1028 = vmatpush1.bf16.msra.mxu0 0
    %1029 = vmatprep.subr.bf16.mxu0 0
    %1030 = vmatpush1.bf16.msra.mxu0 0
    %1031 = vmatprep.subr.bf16.mxu0 0
    %1032 = vmatpush1.bf16.msra.mxu0 0
    %1033 = vmatprep.subr.bf16.mxu0 0
    %1034 = vmatpush1.bf16.msra.mxu0 0
    %1035 = vmatprep.subr.bf16.mxu0 0
    %1036 = vmatpush1.bf16.msra.mxu0 0
    %1037 = vmatprep.subr.bf16.mxu0 0
    %1038 = vmatpush1.bf16.msra.mxu0 0
    %1039 = vmatprep.subr.bf16.mxu0 0
    %1040 = vmatpush1.bf16.msra.mxu0 0
    %1041 = vmatprep.mubr.bf16.mxu0 0
    %1042 = vmatmul.mubr.bf16.gmra.mrb[0].mxu0 %v937
    %v1043 = vpop.f32.mrb[0].mxu0
    %v1044 = vadd.f32 %v959, %v1043
    %v1045 = vpop.f32.mrb[0].mxu0
    %v1046 = vpop.f32.mrb[0].mxu0
    %v1047 = vadd.f32 %v959, %v1046
    %v1048 = vpop.f32.mrb[0].mxu0
    %1049 = vdwg.mxu0
    %v1050 = vsub.f32 %v1044, %v359
    %v1051 = vsub.f32 %v1047, %v365
    %v1052 = vmul.f32 %v1050, %v1050
    %v1053 = vmul.f32 %v1051, %v1051
    %v1054 = vadd.f32 %v1052, %v1053
    %1055 = vadd.xlane.f32.xlu0 %v1054
    %v1056 = vpop.xlane.xlu0 %1055
    %v1057 = vrot.slane %v1056, 4
    %v1058 = vadd.f32 %v1056, %v1057
    %v1059 = vrot.slane %v1058, 2
    %v1060 = vadd.f32 %v1058, %v1059
    %v1061 = vrot.slane %v1060, 1
    %v1062 = vadd.f32 %v1060, %v1061
    %s1063 = vtos %v1062
    %s1064 = smul.f32 %s1063, 0.0625
    %s1065 = sxor.u32 %s1064, 2147483648
    %v1066 = vstv %s1065
    %v1067 = vmul.f32 %v1066, 1.442695
    %v1068 = vpow.pop %v1067
    %s1069 = vtos %v1068
    %s1070 = sadd.f32 %s1069, 1.0
    %v1071 = vstv %s1070
    %v1072 = vrcp.pop %v1071
    %s1073 = vtos %v1072
    %v1074 = vstv %s1073
    %v1075 = vmul.f32 %v1074, %v1050
    %v1076 = vmul.f32 %v1074, %v1051
    %v1077 = vadd.f32 %v359, %v1075
    %v1078 = vadd.f32 %v365, %v1076
    %1079 = vst [vmem:[%s12] sm:$0xff] %v1077
    %1080 = vst [vmem:[%s12 + $0x8] sm:$0xff] %v1078
    // Predicated region
    $region78: #{gawkan_forward_pallas.1} parent=1 // pred_check
      _
    $region79: #{gawkan_forward_pallas.1} parent=1 // pred_check_branch
      %1082 = sbr.rel (0) target = $region81
    $region80: #{gawkan_forward_pallas.1} parent=1 // pred_region
      _
    $region81: #{gawkan_forward_pallas.1} parent=1 // pred_fallthru
      _
    // Predicated region
    $region82: #{gawkan_forward_pallas.1} parent=1 // pred_check
      _
    $region83: #{gawkan_forward_pallas.1} parent=1 // pred_check_branch
      %1084 = sbr.rel (0) target = $region85
    $region84: #{gawkan_forward_pallas.1} parent=1 // pred_region
      _
    $region85: #{gawkan_forward_pallas.1} parent=1 // pred_fallthru
      _
    %1085 = vsyncpa [#allocation3], 1
    %1086 = vsyncpa [#allocation5], 1
    %1087 = vsyncpa [#allocation8], 1
    %1088 = vsyncpa [#allocation11], 1

</llo_original>
